<compile_context>
chip_gen: v7x
topology: tpu7x:2x2x1
jax: 0.10.0
libtpu: 0.0.40
codegen_flags: <defaults>
</compile_context>

<pallas_src>
import functools

import jax
import jax.numpy as jnp
from jax.experimental import pallas as pl
from jax.experimental.pallas import tpu as pltpu


def _round_up(n, m):
    return ((n + m - 1) // m) * m


def _cdiv(a, b):
    return -(-a // b)


def encoder_kernel(x_ref, w1_ref, w2_ref, wmv_ref, bias_ref, out_ref,
                   *, hid_p, out_p, compute_dtype):
    """Hot path: 3 MXU matmuls + 2 LeakyReLU(0.2), all in VMEM."""
    x = x_ref[...].astype(compute_dtype)          # cast in-kernel (VPU, hidden)

    b = bias_ref[...]                             # (8, W) packed f32 biases
    b1 = b[0:1, :hid_p]                           # (1, hid_p)
    b2 = b[1:2, :hid_p]                           # (1, hid_p)
    bmv = b[2:3, :out_p]                          # (1, out_p) = bm | bv | 0-pad

    h = jnp.dot(x, w1_ref[...], preferred_element_type=jnp.float32) + b1
    h = jnp.maximum(h, 0.2 * h)                   # LeakyReLU(0.2)

    h = jnp.dot(h.astype(compute_dtype), w2_ref[...],
                preferred_element_type=jnp.float32) + b2
    h = jnp.maximum(h, 0.2 * h)                   # LeakyReLU(0.2)

    out_ref[...] = (jnp.dot(h.astype(compute_dtype), wmv_ref[...],
                            preferred_element_type=jnp.float32) + bmv
                    ).astype(out_ref.dtype)


def prepare_params(params, *, compute_dtype=jnp.bfloat16):
    """One-time prep: pad/transpose-free weights (already (in,out)), fuse the
    mean/var heads into one (hidden, 2*latent) matrix, pack all biases into a
    single (8, W) block. Call once; reuse the result for every forward."""
    input_dim, hidden_dim = params["w1"].shape
    latent_dim = params["wm"].shape[1]

    hid_p = _round_up(hidden_dim, 128)
    out_p = _round_up(2 * latent_dim, 128)
    bw = max(hid_p, out_p)
    f32 = jnp.float32

    def padded(a, shape):
        buf = jnp.zeros(shape, f32)
        return buf.at[:a.shape[0], :a.shape[1]].set(a.astype(f32))

    w1 = padded(params["w1"], (input_dim, hid_p)).astype(compute_dtype)
    w2 = padded(params["w2"], (hid_p, hid_p)).astype(compute_dtype)
    wmv = padded(jnp.concatenate([params["wm"], params["wv"]], axis=1),
                 (hid_p, out_p)).astype(compute_dtype)

    # Packed biases (f32): row0=b1, row1=b2, row2=bm|bv. Padded entries are 0
    # so LeakyReLU(0)=0 keeps padded hidden columns inert.
    bias = jnp.zeros((8, bw), f32)
    bias = bias.at[0, :hidden_dim].set(params["b1"].reshape(-1))
    bias = bias.at[1, :hidden_dim].set(params["b2"].reshape(-1))
    bias = bias.at[2, :latent_dim].set(params["bm"].reshape(-1))
    bias = bias.at[2, latent_dim:2 * latent_dim].set(params["bv"].reshape(-1))

    return dict(w1=w1, w2=w2, wmv=wmv, bias=bias,
                input_dim=input_dim, hidden_dim=hidden_dim,
                latent_dim=latent_dim, hid_p=hid_p, out_p=out_p, bw=bw,
                compute_dtype=compute_dtype)


def encoder_forward(x, prepped, *, batch_tile=2048):
    """x: (B, input_dim) float32. prepped: output of prepare_params.

    Returns (mean, log_var), each (B, latent_dim) float32.
    """
    B, input_dim = x.shape
    assert input_dim == prepped["input_dim"]
    hid_p, out_p, bw = prepped["hid_p"], prepped["out_p"], prepped["bw"]
    latent_dim = prepped["latent_dim"]
    compute_dtype = prepped["compute_dtype"]

    # Batch tiling: evenly split, 8-aligned tiles; >=2 grid steps for larger
    # batches so v7x's two TensorCores both get work (grid axis is "parallel").
    steps = max(1, _cdiv(B, batch_tile))
    if B >= 16:
        steps = max(steps, 2)
    bt = _round_up(_cdiv(B, steps), 8)
    if bt >= B:
        bt = B                      # single full-batch block (full-dim block ok)
    grid = (_cdiv(B, bt),)

    kernel = functools.partial(encoder_kernel, hid_p=hid_p, out_p=out_p,
                               compute_dtype=compute_dtype)

    out = pl.pallas_call(
        kernel,
        out_shape=jax.ShapeDtypeStruct((B, out_p), jnp.float32),
        grid_spec=pltpu.PrefetchScalarGridSpec(
            num_scalar_prefetch=0,
            grid=grid,
            in_specs=[
                pl.BlockSpec((bt, input_dim), lambda i: (i, 0)),     # x tile (f32)
                pl.BlockSpec((input_dim, hid_p), lambda i: (0, 0)),  # w1 (resident)
                pl.BlockSpec((hid_p, hid_p), lambda i: (0, 0)),      # w2 (resident)
                pl.BlockSpec((hid_p, out_p), lambda i: (0, 0)),      # wm|wv (resident)
                pl.BlockSpec((8, bw), lambda i: (0, 0)),             # packed biases
            ],
            out_specs=pl.BlockSpec((bt, out_p), lambda i: (i, 0)),
        ),
        compiler_params=pltpu.CompilerParams(
            dimension_semantics=("parallel",)),
    )(x, prepped["w1"], prepped["w2"], prepped["wmv"], prepped["bias"])

    mean = out[:, :latent_dim]
    log_var = out[:, latent_dim:2 * latent_dim]
    return mean, log_var


def init_params(key, input_dim, hidden_dim, latent_dim):
    """Deterministic init mimicking nn.Linear default (uniform +-1/sqrt(fan_in)).
    Weights are stored as (in, out), i.e. already transposed vs PyTorch."""
    def linear(key, fan_in, fan_out):
        kw, kb = jax.random.split(key)
        bound = 1.0 / jnp.sqrt(fan_in)
        w = jax.random.uniform(kw, (fan_in, fan_out), jnp.float32, -bound, bound)
        b = jax.random.uniform(kb, (1, fan_out), jnp.float32, -bound, bound)
        return w, b

    k1, k2, k3, k4 = jax.random.split(key, 4)
    w1, b1 = linear(k1, input_dim, hidden_dim)
    w2, b2 = linear(k2, hidden_dim, hidden_dim)
    wm, bm = linear(k3, hidden_dim, latent_dim)
    wv, bv = linear(k4, hidden_dim, latent_dim)
    return dict(w1=w1, b1=b1, w2=w2, b2=b2, wm=wm, bm=bm, wv=wv, bv=bv)


def encoder_ref(x, p):
    def leaky(h):
        return jnp.where(h > 0, h, 0.2 * h)
    h = leaky(x @ p["w1"] + p["b1"])
    h = leaky(h @ p["w2"] + p["b2"])
    return h @ p["wm"] + p["bm"], h @ p["wv"] + p["bv"]


if __name__ == "__main__":
    # Small shapes consistent with the module's forward:
    batch, input_dim, hidden_dim, latent_dim = 8, 64, 32, 16

    key = jax.random.PRNGKey(0)
    kx, kp = jax.random.split(key)
    x = jax.random.normal(kx, (batch, input_dim), jnp.float32)
    params = init_params(kp, input_dim, hidden_dim, latent_dim)
    mean_ref, logvar_ref = encoder_ref(x, params)

    # Perf path: bf16 MXU operands, f32 accumulation.
    prepped_bf16 = prepare_params(params, compute_dtype=jnp.bfloat16)
    mean, log_var = encoder_forward(x, prepped_bf16)
    jax.block_until_ready((mean, log_var))
    assert mean.shape == (batch, latent_dim)
    assert log_var.shape == (batch, latent_dim)
    assert jnp.allclose(mean, mean_ref, atol=3e-2, rtol=3e-2)
    assert jnp.allclose(log_var, logvar_ref, atol=3e-2, rtol=3e-2)

    # Tight structural check with f32 operands (same kernel, exact math path).
    prepped_f32 = prepare_params(params, compute_dtype=jnp.float32)
    mean32, logvar32 = encoder_forward(x, prepped_f32)
    jax.block_until_ready((mean32, logvar32))
    assert jnp.allclose(mean32, mean_ref, atol=1e-5)
    assert jnp.allclose(logvar32, logvar_ref, atol=1e-5)

    print("KERNEL_OK")
</pallas_src>

<mosaic_0001>
module attributes {stable_mosaic.version = 11 : i64} {
  func.func @encoder_kernel(%arg0: i32, %arg1: memref<8x64xf32, #tpu.memory_space<vmem>>, %arg2: memref<64x128xbf16, #tpu.memory_space<vmem>>, %arg3: memref<128x128xbf16, #tpu.memory_space<vmem>>, %arg4: memref<128x128xbf16, #tpu.memory_space<vmem>>, %arg5: memref<8x128xf32, #tpu.memory_space<vmem>>, %arg6: memref<8x128xf32, #tpu.memory_space<vmem>>) attributes {dimension_semantics = [#tpu.dimension_semantics<parallel>], iteration_bounds = array<i64: 1>, scalar_prefetch = 0 : i64, scratch_operands = 0 : i64, tpu.core_type = #tpu.core_type<tc>, window_params = [{transform_indices = @transform_0, window_bounds = array<i64: 8, 64>}, {pipeline_mode = #tpu.pipeline_mode<synchronous>, transform_indices = @transform_1, window_bounds = array<i64: 64, 128>}, {pipeline_mode = #tpu.pipeline_mode<synchronous>, transform_indices = @transform_2, window_bounds = array<i64: 128, 128>}, {pipeline_mode = #tpu.pipeline_mode<synchronous>, transform_indices = @transform_3, window_bounds = array<i64: 128, 128>}, {pipeline_mode = #tpu.pipeline_mode<synchronous>, transform_indices = @transform_4, window_bounds = array<i64: 8, 128>}, {transform_indices = @transform_5, window_bounds = array<i64: 8, 128>}]} {
    %c0 = arith.constant 0 : index
    %c0_0 = arith.constant 0 : index
    %0 = vector.load %arg1[%c0, %c0_0] : memref<8x64xf32, #tpu.memory_space<vmem>>, vector<8x64xf32>
    %1 = arith.truncf %0 : vector<8x64xf32> to vector<8x64xbf16>
    %c0_1 = arith.constant 0 : index
    %c0_2 = arith.constant 0 : index
    %2 = vector.load %arg5[%c0_1, %c0_2] : memref<8x128xf32, #tpu.memory_space<vmem>>, vector<8x128xf32>
    %3 = vector.extract_strided_slice %2 {offsets = [0, 0], sizes = [1, 128], strides = [1, 1]} : vector<8x128xf32> to vector<1x128xf32>
    %4 = vector.extract_strided_slice %2 {offsets = [1, 0], sizes = [1, 128], strides = [1, 1]} : vector<8x128xf32> to vector<1x128xf32>
    %5 = vector.extract_strided_slice %2 {offsets = [2, 0], sizes = [1, 128], strides = [1, 1]} : vector<8x128xf32> to vector<1x128xf32>
    %c0_3 = arith.constant 0 : index
    %c0_4 = arith.constant 0 : index
    %6 = vector.load %arg2[%c0_3, %c0_4] : memref<64x128xbf16, #tpu.memory_space<vmem>>, vector<64x128xbf16>
    %cst = arith.constant dense<0.000000e+00> : vector<8x128xf32>
    %7 = tpu.matmul %1, %6, %cst {dimension_numbers = #tpu.dot_dimension_numbers<[1], [0], [0], [1], [0, 0, 1, 1], [], []>} : vector<8x64xbf16>, vector<64x128xbf16>, vector<8x128xf32> -> vector<8x128xf32>
    %8 = vector.broadcast %3 : vector<1x128xf32> to vector<8x128xf32>
    %9 = arith.addf %7, %8 : vector<8x128xf32>
    %cst_5 = arith.constant 2.000000e-01 : f32
    %10 = vector.broadcast %cst_5 : f32 to vector<8x128xf32>
    %11 = arith.mulf %10, %9 : vector<8x128xf32>
    %12 = arith.maximumf %9, %11 : vector<8x128xf32>
    %13 = arith.truncf %12 : vector<8x128xf32> to vector<8x128xbf16>
    %c0_6 = arith.constant 0 : index
    %c0_7 = arith.constant 0 : index
    %14 = vector.load %arg3[%c0_6, %c0_7] : memref<128x128xbf16, #tpu.memory_space<vmem>>, vector<128x128xbf16>
    %cst_8 = arith.constant dense<0.000000e+00> : vector<8x128xf32>
    %15 = tpu.matmul %13, %14, %cst_8 {dimension_numbers = #tpu.dot_dimension_numbers<[1], [0], [0], [1], [0, 0, 1, 1], [], []>} : vector<8x128xbf16>, vector<128x128xbf16>, vector<8x128xf32> -> vector<8x128xf32>
    %16 = vector.broadcast %4 : vector<1x128xf32> to vector<8x128xf32>
    %17 = arith.addf %15, %16 : vector<8x128xf32>
    %cst_9 = arith.constant 2.000000e-01 : f32
    %18 = vector.broadcast %cst_9 : f32 to vector<8x128xf32>
    %19 = arith.mulf %18, %17 : vector<8x128xf32>
    %20 = arith.maximumf %17, %19 : vector<8x128xf32>
    %21 = arith.truncf %20 : vector<8x128xf32> to vector<8x128xbf16>
    %c0_10 = arith.constant 0 : index
    %c0_11 = arith.constant 0 : index
    %22 = vector.load %arg4[%c0_10, %c0_11] : memref<128x128xbf16, #tpu.memory_space<vmem>>, vector<128x128xbf16>
    %cst_12 = arith.constant dense<0.000000e+00> : vector<8x128xf32>
    %23 = tpu.matmul %21, %22, %cst_12 {dimension_numbers = #tpu.dot_dimension_numbers<[1], [0], [0], [1], [0, 0, 1, 1], [], []>} : vector<8x128xbf16>, vector<128x128xbf16>, vector<8x128xf32> -> vector<8x128xf32>
    %24 = vector.broadcast %5 : vector<1x128xf32> to vector<8x128xf32>
    %25 = arith.addf %23, %24 : vector<8x128xf32>
    %c0_13 = arith.constant 0 : index
    %c0_14 = arith.constant 0 : index
    %26 = vector.load %arg6[%c0_13, %c0_14] : memref<8x128xf32, #tpu.memory_space<vmem>>, vector<8x128xf32>
    tpu.vector_store %arg6[%c0_13, %c0_14], %25 {strides = array<i32>} : memref<8x128xf32, #tpu.memory_space<vmem>>, vector<8x128xf32>,
    return
  }
  func.func @transform_0(%arg0: i32) -> (i32, i32) {
    %c0_i32 = arith.constant 0 : i32
    %c0_i32_0 = arith.constant 0 : i32
    return %arg0, %c0_i32 : i32, i32
  }
  func.func @transform_1(%arg0: i32) -> (i32, i32) {
    %c0_i32 = arith.constant 0 : i32
    %c0_i32_0 = arith.constant 0 : i32
    %c0_i32_1 = arith.constant 0 : i32
    return %c0_i32, %c0_i32_0 : i32, i32
  }
  func.func @transform_2(%arg0: i32) -> (i32, i32) {
    %c0_i32 = arith.constant 0 : i32
    %c0_i32_0 = arith.constant 0 : i32
    %c0_i32_1 = arith.constant 0 : i32
    return %c0_i32, %c0_i32_0 : i32, i32
  }
  func.func @transform_3(%arg0: i32) -> (i32, i32) {
    %c0_i32 = arith.constant 0 : i32
    %c0_i32_0 = arith.constant 0 : i32
    %c0_i32_1 = arith.constant 0 : i32
    return %c0_i32, %c0_i32_0 : i32, i32
  }
  func.func @transform_4(%arg0: i32) -> (i32, i32) {
    %c0_i32 = arith.constant 0 : i32
    %c0_i32_0 = arith.constant 0 : i32
    %c0_i32_1 = arith.constant 0 : i32
    return %c0_i32, %c0_i32_0 : i32, i32
  }
  func.func @transform_5(%arg0: i32) -> (i32, i32) {
    %c0_i32 = arith.constant 0 : i32
    %c0_i32_0 = arith.constant 0 : i32
    return %arg0, %c0_i32 : i32, i32
  }
}

</mosaic_0001>

<llo_original>
// kernel: tpu_custom_call.1
$region0: #{tpu_custom_call.1}
  #allocation0 [shape = 'u32[]', space=smem, size = 0x4, offset = 0x4, fixed_abs, tag = 'smem constant byte address 0x4 - core index']
  #allocation1 [shape = 'u32[144,128]{1,0:T(1,128)}', space=vmem, size = 0x12000, scoped, tag = 'internal scratch']
  %s0 = inlined_call_operand.hbm [shape: f32[8,64], index: 0, kind: input, shape index: {}]
  %s1 = inlined_call_operand.hbm [shape: bf16[64,128], index: 1, kind: input, shape index: {}]
  %s2 = inlined_call_operand.hbm [shape: bf16[128,128], index: 2, kind: input, shape index: {}]
  %s3 = inlined_call_operand.hbm [shape: bf16[128,128], index: 3, kind: input, shape index: {}]
  %s4 = inlined_call_operand.vmem [shape: f32[8,128], index: 4, kind: input, shape index: {}]
  %s5 = inlined_call_operand.hbm [shape: f32[8,128], index: 5, kind: output, shape index: {}]
  %s6 = sld [smem:[#allocation0]]
  $region46: #{tpu_custom_call.1} parent=0
    _
  %s8 = ssub.s32 1, %s6
  %s9 = scalar_select 0, %s8, %s6
  $region1: #{tpu_custom_call.1} parent=0
    #allocation2 [shape = 'u8[4096]{0}', space=vmem, size = 0x1000, scoped, tag = 'input window, operand 0, single buffered']
    #allocation3 [shape = 's32[1]{0}', space=sflag, size = 0x4, scoped, tag = 'scoped memory for tpu_custom_call.1']
    #allocation4 [shape = 's32[1]{0}', space=sflag, size = 0x4, scoped, tag = 'scoped memory for tpu_custom_call.1']
    #allocation5 [shape = 'u8[16384]{0}', space=vmem, size = 0x4000, scoped, tag = 'input window, operand 1, single buffered']
    #allocation6 [shape = 's32[1]{0}', space=sflag, size = 0x4, scoped, tag = 'scoped memory for tpu_custom_call.1']
    #allocation7 [shape = 'u8[32768]{0}', space=vmem, size = 0x8000, scoped, tag = 'input window, operand 2, single buffered']
    #allocation8 [shape = 'u8[32768]{0}', space=vmem, size = 0x8000, scoped, tag = 'input window, operand 3, single buffered']
    #allocation9 [shape = 's32[1]{0}', space=sflag, size = 0x4, scoped, tag = 'scoped memory for tpu_custom_call.1']
    #allocation10 [shape = 'u8[4096]{0}', space=vmem, size = 0x1000, scoped, tag = 'output window, operand 0, single buffered']
    %10 = vsyncpa [#allocation3], 0
    %11 = vsyncpa [#allocation6], 0
    %12 = vsyncpa [#allocation9], 0
    %13 = vsyncpa [#allocation4], 0
    // Predicated region
    $region2: #{tpu_custom_call.1} parent=1 // pred_check
      _
    $region3: #{tpu_custom_call.1} parent=1 // pred_check_branch
      %15 = sbr.rel (0) target = $region5
    $region4: #{tpu_custom_call.1} parent=1 // pred_region
      %s17 = ssub.s32 128, 128
      %18 = vsyncadd [#allocation3], %s17
      %s20 = sshll.u32 [#allocation2], 4
      %s21 = int_to_ptr.vmem [resolvable:$true] %s20
      %23 = dma.hbm_to_vmem [thread:$0]  %s0, 128, %s21, [#allocation3]
    $region5: #{tpu_custom_call.1} parent=1 // pred_fallthru
      _
    // Predicated region
    $region6: #{tpu_custom_call.1} parent=1 // pred_check
      _
    $region7: #{tpu_custom_call.1} parent=1 // pred_check_branch
      %25 = sbr.rel (0) target = $region9
    $region8: #{tpu_custom_call.1} parent=1 // pred_region
      %s27 = ssub.s32 512, 512
      %28 = vsyncadd [#allocation6], %s27
      %s29 = sshll.u32 [#allocation5], 4
      %s30 = int_to_ptr.vmem [resolvable:$true] %s29
      %35 = dma.hbm_to_vmem [thread:$0]  %s1, 512, %s30, [#allocation6], 64, 64, 4
    $region9: #{tpu_custom_call.1} parent=1 // pred_fallthru
      _
    // Predicated region
    $region10: #{tpu_custom_call.1} parent=1 // pred_check
      _
    $region11: #{tpu_custom_call.1} parent=1 // pred_check_branch
      %37 = sbr.rel (0) target = $region13
    $region12: #{tpu_custom_call.1} parent=1 // pred_region
      %s39 = ssub.s32 1024, 1024
      %40 = vsyncadd [#allocation6], %s39
      %s41 = sshll.u32 [#allocation7], 4
      %s42 = int_to_ptr.vmem [resolvable:$true] %s41
      %47 = dma.hbm_to_vmem [thread:$0]  %s2, 1024, %s42, [#allocation6], 64, 64, 4
    $region13: #{tpu_custom_call.1} parent=1 // pred_fallthru
      _
    // Predicated region
    $region14: #{tpu_custom_call.1} parent=1 // pred_check
      _
    $region15: #{tpu_custom_call.1} parent=1 // pred_check_branch
      %49 = sbr.rel (0) target = $region17
    $region16: #{tpu_custom_call.1} parent=1 // pred_region
      %s51 = ssub.s32 1024, 1024
      %52 = vsyncadd [#allocation9], %s51
      %s53 = sshll.u32 [#allocation8], 4
      %s54 = int_to_ptr.vmem [resolvable:$true] %s53
      %59 = dma.hbm_to_vmem [thread:$0]  %s3, 1024, %s54, [#allocation9], 64, 64, 4
    $region17: #{tpu_custom_call.1} parent=1 // pred_fallthru
      _
    // Predicated region
    $region18: #{tpu_custom_call.1} parent=1 // pred_check
      _
    $region19: #{tpu_custom_call.1} parent=1 // pred_check_branch
      %61 = sbr.rel (0) target = $region21
    $region20: #{tpu_custom_call.1} parent=1 // pred_region
      _
    $region21: #{tpu_custom_call.1} parent=1 // pred_fallthru
      _
    // Predicated region
    $region22: #{tpu_custom_call.1} parent=1 // pred_check
      _
    $region23: #{tpu_custom_call.1} parent=1 // pred_check_branch
      %63 = sbr.rel (0) target = $region25
    $region24: #{tpu_custom_call.1} parent=1 // pred_region
      %64 = dma.done [#allocation3], 128
    $region25: #{tpu_custom_call.1} parent=1 // pred_fallthru
      _
    // Predicated region
    $region26: #{tpu_custom_call.1} parent=1 // pred_check
      _
    $region27: #{tpu_custom_call.1} parent=1 // pred_check_branch
      %66 = sbr.rel (0) target = $region29
    $region28: #{tpu_custom_call.1} parent=1 // pred_region
      %67 = dma.done [#allocation6], 512
    $region29: #{tpu_custom_call.1} parent=1 // pred_fallthru
      _
    // Predicated region
    $region30: #{tpu_custom_call.1} parent=1 // pred_check
      _
    $region31: #{tpu_custom_call.1} parent=1 // pred_check_branch
      %69 = sbr.rel (0) target = $region33
    $region32: #{tpu_custom_call.1} parent=1 // pred_region
      %70 = dma.done [#allocation6], 1024
    $region33: #{tpu_custom_call.1} parent=1 // pred_fallthru
      _
    // Predicated region
    $region34: #{tpu_custom_call.1} parent=1 // pred_check
      _
    $region35: #{tpu_custom_call.1} parent=1 // pred_check_branch
      %72 = sbr.rel (0) target = $region37
    $region36: #{tpu_custom_call.1} parent=1 // pred_region
      %73 = dma.done [#allocation9], 1024
    $region37: #{tpu_custom_call.1} parent=1 // pred_fallthru
      _
    %v75 = vld [vmem:[#allocation2] sm:$0xff]
    %v76 = vpack.c.bf16 %v75, %v75
    %v77 = vld [vmem:[%s4] sm:$0xff]
    %v78 = vld [vmem:[#allocation5] sm:$0xf]
    %v79 = vld [vmem:[#allocation5 + $0x4] sm:$0xf]
    %v80 = vld [vmem:[#allocation5 + $0x8] sm:$0xf]
    %v81 = vld [vmem:[#allocation5 + $0xc] sm:$0xf]
    %v82 = vld [vmem:[#allocation5 + $0x10] sm:$0xf]
    %v83 = vld [vmem:[#allocation5 + $0x14] sm:$0xf]
    %v84 = vld [vmem:[#allocation5 + $0x18] sm:$0xf]
    %v85 = vld [vmem:[#allocation5 + $0x1c] sm:$0xf]
    %v86 = vlaneseq
    %v87 = vshrl.u32 %v86, 7
    %v88 = vsub.s32 0, %v87
    %v89 = vrot.slane %v77, %v88
    %v98 = vunpack.c.l.b16 %v78
    %v99 = vunpack.c.l.b16 %v79
    %v100 = vunpack.c.l.b16 %v80
    %v101 = vunpack.c.l.b16 %v81
    %v102 = vunpack.c.l.b16 %v82
    %v103 = vunpack.c.l.b16 %v83
    %v104 = vunpack.c.l.b16 %v84
    %v105 = vunpack.c.l.b16 %v85
    %v106 = vpack.c.b16 %v99, %v98
    %v107 = vpack.c.b16 %v101, %v100
    %v108 = vpack.c.b16 %v103, %v102
    %v109 = vpack.c.b16 %v105, %v104
    %vm114 = vcmask 523264
    %v116 = vsel %vm114, %v76, 0
    %118 = vmatprep.subr.bf16.mxu0 0
    %119 = vmatpush1.bf16.msra.mxu0 %v106
    %120 = vmatprep.subr.bf16.mxu0 0
    %121 = vmatpush1.bf16.msra.mxu0 %v107
    %122 = vmatprep.subr.bf16.mxu0 0
    %123 = vmatpush1.bf16.msra.mxu0 %v108
    %124 = vmatprep.subr.bf16.mxu0 0
    %125 = vmatpush1.bf16.msra.mxu0 %v109
    %126 = vmatprep.subr.bf16.mxu0 0
    %127 = vmatpush1.bf16.msra.mxu0 0
    %128 = vmatprep.subr.bf16.mxu0 0
    %129 = vmatpush1.bf16.msra.mxu0 0
    %130 = vmatprep.subr.bf16.mxu0 0
    %131 = vmatpush1.bf16.msra.mxu0 0
    %132 = vmatprep.subr.bf16.mxu0 0
    %133 = vmatpush1.bf16.msra.mxu0 0
    %134 = vmatprep.subr.bf16.mxu0 0
    %135 = vmatpush1.bf16.msra.mxu0 0
    %136 = vmatprep.subr.bf16.mxu0 0
    %137 = vmatpush1.bf16.msra.mxu0 0
    %138 = vmatprep.subr.bf16.mxu0 0
    %139 = vmatpush1.bf16.msra.mxu0 0
    %140 = vmatprep.subr.bf16.mxu0 0
    %141 = vmatpush1.bf16.msra.mxu0 0
    %142 = vmatprep.subr.bf16.mxu0 0
    %143 = vmatpush1.bf16.msra.mxu0 0
    %144 = vmatprep.subr.bf16.mxu0 0
    %145 = vmatpush1.bf16.msra.mxu0 0
    %146 = vmatprep.subr.bf16.mxu0 0
    %147 = vmatpush1.bf16.msra.mxu0 0
    %148 = vmatprep.subr.bf16.mxu0 0
    %149 = vmatpush1.bf16.msra.mxu0 0
    %150 = vmatprep.mubr.bf16.mxu0 0
    %151 = vmatmul.mubr.bf16.gmra.mrb[0].mxu0 %v116
    %v152 = vpop.f32.mrb[0].mxu0
    %v153 = vadd.f32 %v89, %v152
    %v154 = vpop.f32.mrb[0].mxu0
    %v155 = vpop.f32.mrb[0].mxu0
    %v156 = vpop.f32.mrb[0].mxu0
    %157 = vdwg.mxu0
    %v158 = vmul.f32 %v153, 0.2
    %v159 = vmax.f32 %v153, %v158
    %v160 = vpack.c.bf16 %v159, %v159
    %v161 = vld [vmem:[#allocation7] sm:$0xf]
    %v162 = vld [vmem:[#allocation7 + $0x4] sm:$0xf]
    %v163 = vld [vmem:[#allocation7 + $0x8] sm:$0xf]
    %v164 = vld [vmem:[#allocation7 + $0xc] sm:$0xf]
    %v165 = vld [vmem:[#allocation7 + $0x10] sm:$0xf]
    %v166 = vld [vmem:[#allocation7 + $0x14] sm:$0xf]
    %v167 = vld [vmem:[#allocation7 + $0x18] sm:$0xf]
    %v168 = vld [vmem:[#allocation7 + $0x1c] sm:$0xf]
    %v169 = vld [vmem:[#allocation7 + $0x20] sm:$0xf]
    %v170 = vld [vmem:[#allocation7 + $0x24] sm:$0xf]
    %v171 = vld [vmem:[#allocation7 + $0x28] sm:$0xf]
    %v172 = vld [vmem:[#allocation7 + $0x2c] sm:$0xf]
    %v173 = vld [vmem:[#allocation7 + $0x30] sm:$0xf]
    %v174 = vld [vmem:[#allocation7 + $0x34] sm:$0xf]
    %v175 = vld [vmem:[#allocation7 + $0x38] sm:$0xf]
    %v176 = vld [vmem:[#allocation7 + $0x3c] sm:$0xf]
    %v177 = vlaneseq
    %v178 = vshrl.u32 %v177, 7
    %v179 = vsub.s32 1, %v178
    %v180 = vrot.slane %v77, %v179
    %v197 = vunpack.c.l.b16 %v161
    %v198 = vunpack.c.l.b16 %v162
    %v199 = vunpack.c.l.b16 %v163
    %v200 = vunpack.c.l.b16 %v164
    %v201 = vunpack.c.l.b16 %v165
    %v202 = vunpack.c.l.b16 %v166
    %v203 = vunpack.c.l.b16 %v167
    %v204 = vunpack.c.l.b16 %v168
    %v205 = vunpack.c.l.b16 %v169
    %v206 = vunpack.c.l.b16 %v170
    %v207 = vunpack.c.l.b16 %v171
    %v208 = vunpack.c.l.b16 %v172
    %v209 = vunpack.c.l.b16 %v173
    %v210 = vunpack.c.l.b16 %v174
    %v211 = vunpack.c.l.b16 %v175
    %v212 = vunpack.c.l.b16 %v176
    %v213 = vpack.c.b16 %v198, %v197
    %v214 = vpack.c.b16 %v200, %v199
    %v215 = vpack.c.b16 %v202, %v201
    %v216 = vpack.c.b16 %v204, %v203
    %v217 = vpack.c.b16 %v206, %v205
    %v218 = vpack.c.b16 %v208, %v207
    %v219 = vpack.c.b16 %v210, %v209
    %v220 = vpack.c.b16 %v212, %v211
    %229 = vmatprep.subr.bf16.mxu0 0
    %230 = vmatpush1.bf16.msra.mxu0 %v213
    %231 = vmatprep.subr.bf16.mxu0 0
    %232 = vmatpush1.bf16.msra.mxu0 %v214
    %233 = vmatprep.subr.bf16.mxu0 0
    %234 = vmatpush1.bf16.msra.mxu0 %v215
    %235 = vmatprep.subr.bf16.mxu0 0
    %236 = vmatpush1.bf16.msra.mxu0 %v216
    %237 = vmatprep.subr.bf16.mxu0 0
    %238 = vmatpush1.bf16.msra.mxu0 %v217
    %239 = vmatprep.subr.bf16.mxu0 0
    %240 = vmatpush1.bf16.msra.mxu0 %v218
    %241 = vmatprep.subr.bf16.mxu0 0
    %242 = vmatpush1.bf16.msra.mxu0 %v219
    %243 = vmatprep.subr.bf16.mxu0 0
    %244 = vmatpush1.bf16.msra.mxu0 %v220
    %245 = vmatprep.subr.bf16.mxu0 0
    %246 = vmatpush1.bf16.msra.mxu0 0
    %247 = vmatprep.subr.bf16.mxu0 0
    %248 = vmatpush1.bf16.msra.mxu0 0
    %249 = vmatprep.subr.bf16.mxu0 0
    %250 = vmatpush1.bf16.msra.mxu0 0
    %251 = vmatprep.subr.bf16.mxu0 0
    %252 = vmatpush1.bf16.msra.mxu0 0
    %253 = vmatprep.subr.bf16.mxu0 0
    %254 = vmatpush1.bf16.msra.mxu0 0
    %255 = vmatprep.subr.bf16.mxu0 0
    %256 = vmatpush1.bf16.msra.mxu0 0
    %257 = vmatprep.subr.bf16.mxu0 0
    %258 = vmatpush1.bf16.msra.mxu0 0
    %259 = vmatprep.subr.bf16.mxu0 0
    %260 = vmatpush1.bf16.msra.mxu0 0
    %261 = vmatprep.mubr.bf16.mxu0 0
    %262 = vmatmul.mubr.bf16.gmra.mrb[0].mxu0 %v160
    %v263 = vpop.f32.mrb[0].mxu0
    %v264 = vadd.f32 %v180, %v263
    %v265 = vpop.f32.mrb[0].mxu0
    %v266 = vpop.f32.mrb[0].mxu0
    %v267 = vpop.f32.mrb[0].mxu0
    %268 = vdwg.mxu0
    %v269 = vmul.f32 %v264, 0.2
    %v270 = vmax.f32 %v264, %v269
    %v271 = vpack.c.bf16 %v270, %v270
    %v272 = vld [vmem:[#allocation8] sm:$0xf]
    %v273 = vld [vmem:[#allocation8 + $0x4] sm:$0xf]
    %v274 = vld [vmem:[#allocation8 + $0x8] sm:$0xf]
    %v275 = vld [vmem:[#allocation8 + $0xc] sm:$0xf]
    %v276 = vld [vmem:[#allocation8 + $0x10] sm:$0xf]
    %v277 = vld [vmem:[#allocation8 + $0x14] sm:$0xf]
    %v278 = vld [vmem:[#allocation8 + $0x18] sm:$0xf]
    %v279 = vld [vmem:[#allocation8 + $0x1c] sm:$0xf]
    %v280 = vld [vmem:[#allocation8 + $0x20] sm:$0xf]
    %v281 = vld [vmem:[#allocation8 + $0x24] sm:$0xf]
    %v282 = vld [vmem:[#allocation8 + $0x28] sm:$0xf]
    %v283 = vld [vmem:[#allocation8 + $0x2c] sm:$0xf]
    %v284 = vld [vmem:[#allocation8 + $0x30] sm:$0xf]
    %v285 = vld [vmem:[#allocation8 + $0x34] sm:$0xf]
    %v286 = vld [vmem:[#allocation8 + $0x38] sm:$0xf]
    %v287 = vld [vmem:[#allocation8 + $0x3c] sm:$0xf]
    %v288 = vlaneseq
    %v289 = vshrl.u32 %v288, 7
    %v290 = vsub.s32 2, %v289
    %v291 = vrot.slane %v77, %v290
    %v308 = vunpack.c.l.b16 %v272
    %v309 = vunpack.c.l.b16 %v273
    %v310 = vunpack.c.l.b16 %v274
    %v311 = vunpack.c.l.b16 %v275
    %v312 = vunpack.c.l.b16 %v276
    %v313 = vunpack.c.l.b16 %v277
    %v314 = vunpack.c.l.b16 %v278
    %v315 = vunpack.c.l.b16 %v279
    %v316 = vunpack.c.l.b16 %v280
    %v317 = vunpack.c.l.b16 %v281
    %v318 = vunpack.c.l.b16 %v282
    %v319 = vunpack.c.l.b16 %v283
    %v320 = vunpack.c.l.b16 %v284
    %v321 = vunpack.c.l.b16 %v285
    %v322 = vunpack.c.l.b16 %v286
    %v323 = vunpack.c.l.b16 %v287
    %v324 = vpack.c.b16 %v309, %v308
    %v325 = vpack.c.b16 %v311, %v310
    %v326 = vpack.c.b16 %v313, %v312
    %v327 = vpack.c.b16 %v315, %v314
    %v328 = vpack.c.b16 %v317, %v316
    %v329 = vpack.c.b16 %v319, %v318
    %v330 = vpack.c.b16 %v321, %v320
    %v331 = vpack.c.b16 %v323, %v322
    %340 = vmatprep.subr.bf16.mxu0 0
    %341 = vmatpush1.bf16.msra.mxu0 %v324
    %342 = vmatprep.subr.bf16.mxu0 0
    %343 = vmatpush1.bf16.msra.mxu0 %v325
    %344 = vmatprep.subr.bf16.mxu0 0
    %345 = vmatpush1.bf16.msra.mxu0 %v326
    %346 = vmatprep.subr.bf16.mxu0 0
    %347 = vmatpush1.bf16.msra.mxu0 %v327
    %348 = vmatprep.subr.bf16.mxu0 0
    %349 = vmatpush1.bf16.msra.mxu0 %v328
    %350 = vmatprep.subr.bf16.mxu0 0
    %351 = vmatpush1.bf16.msra.mxu0 %v329
    %352 = vmatprep.subr.bf16.mxu0 0
    %353 = vmatpush1.bf16.msra.mxu0 %v330
    %354 = vmatprep.subr.bf16.mxu0 0
    %355 = vmatpush1.bf16.msra.mxu0 %v331
    %356 = vmatprep.subr.bf16.mxu0 0
    %357 = vmatpush1.bf16.msra.mxu0 0
    %358 = vmatprep.subr.bf16.mxu0 0
    %359 = vmatpush1.bf16.msra.mxu0 0
    %360 = vmatprep.subr.bf16.mxu0 0
    %361 = vmatpush1.bf16.msra.mxu0 0
    %362 = vmatprep.subr.bf16.mxu0 0
    %363 = vmatpush1.bf16.msra.mxu0 0
    %364 = vmatprep.subr.bf16.mxu0 0
    %365 = vmatpush1.bf16.msra.mxu0 0
    %366 = vmatprep.subr.bf16.mxu0 0
    %367 = vmatpush1.bf16.msra.mxu0 0
    %368 = vmatprep.subr.bf16.mxu0 0
    %369 = vmatpush1.bf16.msra.mxu0 0
    %370 = vmatprep.subr.bf16.mxu0 0
    %371 = vmatpush1.bf16.msra.mxu0 0
    %372 = vmatprep.mubr.bf16.mxu0 0
    %373 = vmatmul.mubr.bf16.gmra.mrb[0].mxu0 %v271
    %v374 = vpop.f32.mrb[0].mxu0
    %v375 = vadd.f32 %v291, %v374
    %v376 = vpop.f32.mrb[0].mxu0
    %v377 = vpop.f32.mrb[0].mxu0
    %v378 = vpop.f32.mrb[0].mxu0
    %379 = vdwg.mxu0
    %380 = vst [vmem:[#allocation10] sm:$0xff] %v375
    // Predicated region
    $region38: #{tpu_custom_call.1} parent=1 // pred_check
      _
    $region39: #{tpu_custom_call.1} parent=1 // pred_check_branch
      %382 = sbr.rel (0) target = $region41
    $region40: #{tpu_custom_call.1} parent=1 // pred_region
      %s384 = ssub.s32 128, 128
      %385 = vsyncadd [#allocation4], %s384
      %s387 = sshll.u32 [#allocation10], 4
      %s388 = int_to_ptr.vmem [resolvable:$true] %s387
      %390 = dma.vmem_to_hbm [thread:$0]  %s388, 128, %s5, [#allocation4]
    $region41: #{tpu_custom_call.1} parent=1 // pred_fallthru
      _
    // Predicated region
    $region42: #{tpu_custom_call.1} parent=1 // pred_check
      _
    $region43: #{tpu_custom_call.1} parent=1 // pred_check_branch
      %392 = sbr.rel (0) target = $region45
    $region44: #{tpu_custom_call.1} parent=1 // pred_region
      %393 = dma.done [#allocation4], 128
    $region45: #{tpu_custom_call.1} parent=1 // pred_fallthru
      _
    %394 = vsyncpa [#allocation3], 1
    %395 = vsyncpa [#allocation6], 1
    %396 = vsyncpa [#allocation9], 1
    %397 = vsyncpa [#allocation4], 1

</llo_original>
